<compile_context>
chip_gen: v6e
topology: v6e:2x2x1
jax: 0.10.0
libtpu: 0.0.40
codegen_flags: <defaults>
</compile_context>

<pallas_src>
import functools

import jax
import jax.numpy as jnp
from jax import lax
from jax.experimental import pallas as pl
from jax.experimental.pallas import tpu as pltpu


def _round_up(x, m):
    return ((x + m - 1) // m) * m


# ------------------------------ fused kernel --------------------------------

def _primary_cap_kernel(*refs, tk, nk, fuse_squash):
    """grid = (n_tiles, nk).

    Refs (fuse_squash=True):  w (Cout, K_pad) resident, p (tk, tN),
                              bias (Cout, 1) f32, group (tN, tN) f32,
                              out (Cout, tN) f32 (resident accumulator).
    """
    if fuse_squash:
        w_ref, p_ref, b_ref, g_ref, o_ref = refs
    else:
        w_ref, p_ref, b_ref, o_ref = refs
        g_ref = None

    kk = pl.program_id(1)

    # Conv-as-matmul partial product for this K tile (weight is VMEM-resident;
    # slice the current K window out of it).
    if nk == 1:
        w = w_ref[...]
    else:
        k0 = pl.multiple_of(kk * tk, 128)      # tk is a multiple of 128 here
        w = w_ref[:, pl.ds(k0, tk)]

    part = jnp.dot(w, p_ref[...], preferred_element_type=jnp.float32)

    if nk == 1:
        o_ref[...] = part
    else:
        @pl.when(kk == 0)
        def _init():
            o_ref[...] = part

        @pl.when(kk > 0)
        def _acc():
            o_ref[...] += part

    @pl.when(kk == nk - 1)
    def _epilogue():
        x = o_ref[...] + b_ref[...]            # f32 bias add (lane broadcast)
        if fuse_squash:
            # Capsules are groups of `dim_capsule` consecutive lanes: every
            # capsule's squared norm (broadcast back to its members) via a
            # block-diagonal grouping matmul -> lane-dense, runs on the MXU.
            sn = jnp.dot(x * x, g_ref[...], preferred_element_type=jnp.float32)
            # squash: sn/(1+sn) * x / sqrt(sn + 1e-9)  (EUP recip + rsqrt).
            scale = (sn * pl.reciprocal(1.0 + sn, approx=False)
                     * lax.rsqrt(sn + 1e-9))
            x = scale * x
        o_ref[...] = x


# ------------------------------- wrapper -------------------------------------

def primary_cap_forward(x, weight, bias, *, dim_capsule, n_channels,
                        kernel_size, stride, padding,
                        compute_dtype=jnp.bfloat16):
    """x: (B, Cin, H, W); weight: (Cout, Cin, k, k); bias: (Cout,)."""
    B, Cin, H, W = x.shape
    Cout = weight.shape[0]
    assert Cout == dim_capsule * n_channels
    k = kernel_size
    D = dim_capsule

    # Patch extraction as ONE XLA glue op, produced directly in (K, B, Ho, Wo)
    # layout so the (K, B*M) matmul operand below is a pure reshape.
    xc = x.astype(compute_dtype)
    patches = lax.conv_general_dilated_patches(
        xc, filter_shape=(k, k), window_strides=(stride, stride),
        padding=[(padding, padding), (padding, padding)],
        dimension_numbers=("NCHW", "OIHW", "CNHW"))
    K, _, Ho, Wo = patches.shape               # K = Cin*k*k, features (c,kh,kw)
    M = Ho * Wo
    N = B * M
    patches = patches.reshape(K, N)            # columns ordered (b, m)

    # ---- K (contraction) tiling: weight stays resident; slice per K tile.
    if K <= 2048:
        tk, nk, K_pad = K, 1, K                # single K step, full-dim block
    else:
        tk = 0
        for cand in range(2048, 0, -128):      # largest 128-multiple dividing K
            if K % cand == 0:
                tk = cand
                break
        if tk:
            nk, K_pad = K // tk, K
        else:
            # TODO(synk): mask the tail K tile in-kernel instead of padding the
            # big patches array (only hit if K > 2048 and 128 does not divide K).
            tk = 2048
            K_pad = _round_up(K, tk)
            nk = K_pad // tk
            patches = jnp.pad(patches, ((0, K_pad - K), (0, 0)))

    w2 = weight.reshape(Cout, K).astype(compute_dtype)
    if K_pad > K:
        w2 = jnp.pad(w2, ((0, 0), (0, K_pad - K)))
    bias_col = bias.astype(jnp.float32).reshape(Cout, 1)

    # ---- N (lane) tiling: multiple of 128 -> full MXU width, unmasked stores.
    tn = N
    for cand in (1024, 512, 256, 128):
        if N % cand == 0:
            tn = cand
            break
    n_tiles = N // tn

    # Squash is fused whenever capsules never straddle rows / tile boundaries.
    fuse_squash = (M % D == 0) and (tn % D == 0)

    in_specs = [
        pl.BlockSpec((Cout, K_pad), lambda n, kk: (0, 0)),   # resident weight
        pl.BlockSpec((tk, tn), lambda n, kk: (kk, n)),       # patches tile
        pl.BlockSpec((Cout, 1), lambda n, kk: (0, 0)),       # f32 bias
    ]
    inputs = [w2, patches, bias_col]
    if fuse_squash:
        # Block-diagonal (tN, tN) grouping matrix of DxD ones (constant block
        # index -> fetched once, stays in VMEM).
        ids = jnp.arange(tn, dtype=jnp.int32) // D
        group = (ids[:, None] == ids[None, :]).astype(jnp.float32)
        in_specs.append(pl.BlockSpec((tn, tn), lambda n, kk: (0, 0)))
        inputs.append(group)

    # Raise the scoped VMEM limit only when the estimated footprint needs it.
    isz = jnp.dtype(compute_dtype).itemsize
    est = (2 * Cout * K_pad * isz + 2 * tk * tn * isz + 2 * Cout * tn * 4
           + 2 * Cout * 4 + (2 * tn * tn * 4 if fuse_squash else 0))
    vmem_limit = (int(min(est * 1.5, 56 * 1024 * 1024))
                  if est > 12 * 1024 * 1024 else None)

    kernel = functools.partial(_primary_cap_kernel, tk=tk, nk=nk,
                               fuse_squash=fuse_squash)
    out = pl.pallas_call(
        kernel,
        out_shape=jax.ShapeDtypeStruct((Cout, N), jnp.float32),
        grid=(n_tiles, nk),
        in_specs=in_specs,
        out_specs=pl.BlockSpec((Cout, tn), lambda n, kk: (0, n)),
        compiler_params=pltpu.CompilerParams(
            dimension_semantics=("parallel", "arbitrary"),
            vmem_limit_bytes=vmem_limit),
    )(*inputs)

    # (Cout, B*M) -> (B, Cout, M): small epilogue transpose of the *output*
    # only; the PyTorch view(B, -1, D) is then a pure reshape.
    n_caps = (Cout * M) // D
    out = out.reshape(Cout, B, M).transpose(1, 0, 2).reshape(B, n_caps, D)

    if not fuse_squash:
        # TODO(synk): capsules straddle channel rows when M % dim_capsule != 0;
        # in that (non-standard) configuration apply squash outside the kernel.
        sn = jnp.sum(out * out, axis=-1, keepdims=True)
        out = sn / (1.0 + sn) * out / jnp.sqrt(sn + 1e-9)
    return out


# ---------------------------- pure-JAX reference -----------------------------

def _reference(x, weight, bias, *, dim_capsule, stride, padding):
    conv = lax.conv_general_dilated(
        x, weight, window_strides=(stride, stride),
        padding=[(padding, padding), (padding, padding)],
        dimension_numbers=("NCHW", "OIHW", "NCHW"),
    ) + bias.reshape(1, -1, 1, 1)
    B = x.shape[0]
    caps = conv.reshape(B, -1, dim_capsule)
    sn = jnp.sum(caps * caps, axis=-1, keepdims=True)
    return sn / (1.0 + sn) * caps / jnp.sqrt(sn + 1e-9)


# ----------------------------------- main ------------------------------------

if __name__ == "__main__":
    # Module config (small, consistent with PrimaryCap semantics)
    in_channels = 4
    dim_capsule = 8
    n_channels = 4          # -> Cout = dim_capsule * n_channels = 32
    kernel_size = 3
    stride = 2
    padding = 1

    B, H, W = 2, 16, 16
    Cout = dim_capsule * n_channels

    key = jax.random.PRNGKey(0)
    kx, kw, kb = jax.random.split(key, 3)
    x = jax.random.normal(kx, (B, in_channels, H, W), dtype=jnp.float32)
    # Deterministic parameter init (Conv2d-like fan-in scaling).
    fan_in = in_channels * kernel_size * kernel_size
    bound = 1.0 / (fan_in ** 0.5)
    weight = jax.random.uniform(kw, (Cout, in_channels, kernel_size, kernel_size),
                                minval=-bound, maxval=bound, dtype=jnp.float32)
    bias = jax.random.uniform(kb, (Cout,), minval=-bound, maxval=bound,
                              dtype=jnp.float32)

    ref = jax.block_until_ready(
        _reference(x, weight, bias, dim_capsule=dim_capsule,
                   stride=stride, padding=padding))

    Ho = (H + 2 * padding - kernel_size) // stride + 1
    Wo = (W + 2 * padding - kernel_size) // stride + 1
    n_caps = Cout * Ho * Wo // dim_capsule

    common = dict(dim_capsule=dim_capsule, n_channels=n_channels,
                  kernel_size=kernel_size, stride=stride, padding=padding)

    # f32 compute path: tight tolerance, verifies layout / capsule ordering.
    fwd32 = jax.jit(functools.partial(primary_cap_forward,
                                      compute_dtype=jnp.float32, **common))
    out32 = jax.block_until_ready(fwd32(x, weight, bias))
    assert out32.shape == ref.shape == (B, n_caps, dim_capsule)
    diff32 = float(jnp.max(jnp.abs(out32 - ref)))
    assert jnp.allclose(out32, ref, atol=1e-2, rtol=1e-2), (
        f"f32 mismatch vs reference, max abs diff {diff32}")

    # Default (bf16 MXU inputs, f32 accumulation + squash) fast path.
    fwd = jax.jit(functools.partial(primary_cap_forward, **common))
    out = jax.block_until_ready(fwd(x, weight, bias))
    assert out.shape == ref.shape
    diff = float(jnp.max(jnp.abs(out - ref)))
    assert jnp.allclose(out, ref, atol=5e-2, rtol=5e-2), (
        f"bf16 mismatch vs reference, max abs diff {diff}")

    print("KERNEL_OK")
</pallas_src>

<mosaic_0001>
module attributes {stable_mosaic.version = 11 : i64} {
  func.func @_primary_cap_kernel(%arg0: i32, %arg1: i32, %arg2: memref<32x36xf32, #tpu.memory_space<vmem>>, %arg3: memref<36x128xf32, #tpu.memory_space<vmem>>, %arg4: memref<32x1xf32, #tpu.memory_space<vmem>>, %arg5: memref<128x128xf32, #tpu.memory_space<vmem>>, %arg6: memref<32x128xf32, #tpu.memory_space<vmem>>) attributes {dimension_semantics = [#tpu.dimension_semantics<parallel>, #tpu.dimension_semantics<arbitrary>], iteration_bounds = array<i64: 1, 1>, scalar_prefetch = 0 : i64, scratch_operands = 0 : i64, tpu.core_type = #tpu.core_type<tc>, window_params = [{pipeline_mode = #tpu.pipeline_mode<synchronous>, transform_indices = @transform_0, window_bounds = array<i64: 32, 36>}, {transform_indices = @transform_1, window_bounds = array<i64: 36, 128>}, {pipeline_mode = #tpu.pipeline_mode<synchronous>, transform_indices = @transform_2, window_bounds = array<i64: 32, 1>}, {pipeline_mode = #tpu.pipeline_mode<synchronous>, transform_indices = @transform_3, window_bounds = array<i64: 128, 128>}, {transform_indices = @transform_4, window_bounds = array<i64: 32, 128>}]} {
    %c0 = arith.constant 0 : index
    %c0_0 = arith.constant 0 : index
    %0 = vector.load %arg2[%c0, %c0_0] : memref<32x36xf32, #tpu.memory_space<vmem>>, vector<32x36xf32>
    %c0_1 = arith.constant 0 : index
    %c0_2 = arith.constant 0 : index
    %1 = vector.load %arg3[%c0_1, %c0_2] : memref<36x128xf32, #tpu.memory_space<vmem>>, vector<36x128xf32>
    %cst = arith.constant dense<0.000000e+00> : vector<32x128xf32>
    %2 = tpu.matmul %0, %1, %cst {dimension_numbers = #tpu.dot_dimension_numbers<[1], [0], [0], [1], [0, 0, 1, 1], [], []>} : vector<32x36xf32>, vector<36x128xf32>, vector<32x128xf32> -> vector<32x128xf32>
    %c0_3 = arith.constant 0 : index
    %c0_4 = arith.constant 0 : index
    %3 = vector.load %arg6[%c0_3, %c0_4] : memref<32x128xf32, #tpu.memory_space<vmem>>, vector<32x128xf32>
    tpu.vector_store %arg6[%c0_3, %c0_4], %2 {strides = array<i32>} : memref<32x128xf32, #tpu.memory_space<vmem>>, vector<32x128xf32>,
    %c0_i32 = arith.constant 0 : i32
    %4 = arith.cmpi eq, %arg1, %c0_i32 : i32
    %5 = arith.extui %4 : i1 to i32
    %c0_i32_5 = arith.constant 0 : i32
    %6 = arith.cmpi ne, %5, %c0_i32_5 : i32
    scf.if %6 {
      %c0_6 = arith.constant 0 : index
      %c0_7 = arith.constant 0 : index
      %7 = vector.load %arg6[%c0_6, %c0_7] : memref<32x128xf32, #tpu.memory_space<vmem>>, vector<32x128xf32>
      %c0_8 = arith.constant 0 : index
      %c0_9 = arith.constant 0 : index
      %8 = vector.load %arg4[%c0_8, %c0_9] : memref<32x1xf32, #tpu.memory_space<vmem>>, vector<32x1xf32>
      %9 = vector.broadcast %8 : vector<32x1xf32> to vector<32x128xf32>
      %10 = arith.addf %7, %9 : vector<32x128xf32>
      %11 = arith.mulf %10, %10 : vector<32x128xf32>
      %c0_10 = arith.constant 0 : index
      %c0_11 = arith.constant 0 : index
      %12 = vector.load %arg5[%c0_10, %c0_11] : memref<128x128xf32, #tpu.memory_space<vmem>>, vector<128x128xf32>
      %cst_12 = arith.constant dense<0.000000e+00> : vector<32x128xf32>
      %13 = tpu.matmul %11, %12, %cst_12 {dimension_numbers = #tpu.dot_dimension_numbers<[1], [0], [0], [1], [0, 0, 1, 1], [], []>} : vector<32x128xf32>, vector<128x128xf32>, vector<32x128xf32> -> vector<32x128xf32>
      %cst_13 = arith.constant 1.000000e+00 : f32
      %14 = vector.broadcast %cst_13 : f32 to vector<32x128xf32>
      %15 = arith.addf %14, %13 : vector<32x128xf32>
      %16 = tpu.reciprocal %15 : vector<32x128xf32> -> vector<32x128xf32>
      %17 = arith.mulf %13, %16 : vector<32x128xf32>
      %cst_14 = arith.constant 9.99999971E-10 : f32
      %18 = vector.broadcast %cst_14 : f32 to vector<32x128xf32>
      %19 = arith.addf %13, %18 : vector<32x128xf32>
      %20 = math.rsqrt %19 : vector<32x128xf32>
      %21 = arith.mulf %17, %20 : vector<32x128xf32>
      %22 = arith.mulf %21, %10 : vector<32x128xf32>
      %c0_15 = arith.constant 0 : index
      %c0_16 = arith.constant 0 : index
      %23 = vector.load %arg6[%c0_15, %c0_16] : memref<32x128xf32, #tpu.memory_space<vmem>>, vector<32x128xf32>
      tpu.vector_store %arg6[%c0_15, %c0_16], %22 {strides = array<i32>} : memref<32x128xf32, #tpu.memory_space<vmem>>, vector<32x128xf32>,
    } else {
    }
    return
  }
  func.func @transform_0(%arg0: i32, %arg1: i32) -> (i32, i32) {
    %c0_i32 = arith.constant 0 : i32
    %c0_i32_0 = arith.constant 0 : i32
    %c0_i32_1 = arith.constant 0 : i32
    return %c0_i32, %c0_i32_0 : i32, i32
  }
  func.func @transform_1(%arg0: i32, %arg1: i32) -> (i32, i32) {
    %c0_i32 = arith.constant 0 : i32
    return %arg1, %arg0 : i32, i32
  }
  func.func @transform_2(%arg0: i32, %arg1: i32) -> (i32, i32) {
    %c0_i32 = arith.constant 0 : i32
    %c0_i32_0 = arith.constant 0 : i32
    %c0_i32_1 = arith.constant 0 : i32
    return %c0_i32, %c0_i32_0 : i32, i32
  }
  func.func @transform_3(%arg0: i32, %arg1: i32) -> (i32, i32) {
    %c0_i32 = arith.constant 0 : i32
    %c0_i32_0 = arith.constant 0 : i32
    %c0_i32_1 = arith.constant 0 : i32
    return %c0_i32, %c0_i32_0 : i32, i32
  }
  func.func @transform_4(%arg0: i32, %arg1: i32) -> (i32, i32) {
    %c0_i32 = arith.constant 0 : i32
    %c0_i32_0 = arith.constant 0 : i32
    return %c0_i32, %arg0 : i32, i32
  }
}

</mosaic_0001>

<llo_original>
// kernel: primary_cap_forward.1
$region0: #{primary_cap_forward.1}
  #allocation0 [shape = 'u32[]', space=smem, size = 0x4, offset = 0x4, fixed_abs, tag = 'smem constant byte address 0x4 - core index']
  #allocation1 [shape = 'u32[144,128]{1,0:T(1,128)}', space=vmem, size = 0x12000, scoped, tag = 'internal scratch']
  %s0 = inlined_call_operand.vmem [shape: f32[32,36], index: 0, kind: input, shape index: {}]
  %s1 = inlined_call_operand.vmem [shape: f32[36,128], index: 1, kind: input, shape index: {}]
  %s2 = inlined_call_operand.vmem [shape: f32[32,1], index: 2, kind: input, shape index: {}]
  %s3 = inlined_call_operand.vmem [shape: f32[128,128], index: 3, kind: input, shape index: {}]
  %s4 = inlined_call_operand.vmem [shape: f32[32,128], index: 4, kind: output, shape index: {}]
  %s5 = sld [smem:[#allocation0]]
  $region30: #{primary_cap_forward.1} parent=0
    _
  %s7 = ssub.s32 1, %s5
  %s8 = scalar_select 0, %s7, %s5
  // Predicated region
  $region2: #{primary_cap_forward.1} parent=0 // pred_check
    _
  $region3: #{primary_cap_forward.1} parent=0 // pred_check_branch
    %10 = sbr.rel (0) target = $region5
  $region4: #{primary_cap_forward.1} parent=0 // pred_region
    _
  $region5: #{primary_cap_forward.1} parent=0 // pred_fallthru
    _
  // Predicated region
  $region6: #{primary_cap_forward.1} parent=0 // pred_check
    _
  $region7: #{primary_cap_forward.1} parent=0 // pred_check_branch
    %12 = sbr.rel (0) target = $region9
  $region8: #{primary_cap_forward.1} parent=0 // pred_region
    _
  $region9: #{primary_cap_forward.1} parent=0 // pred_fallthru
    _
  // Predicated region
  $region10: #{primary_cap_forward.1} parent=0 // pred_check
    _
  $region11: #{primary_cap_forward.1} parent=0 // pred_check_branch
    %14 = sbr.rel (0) target = $region13
  $region12: #{primary_cap_forward.1} parent=0 // pred_region
    _
  $region13: #{primary_cap_forward.1} parent=0 // pred_fallthru
    _
  // Predicated region
  $region14: #{primary_cap_forward.1} parent=0 // pred_check
    _
  $region15: #{primary_cap_forward.1} parent=0 // pred_check_branch
    %16 = sbr.rel (0) target = $region17
  $region16: #{primary_cap_forward.1} parent=0 // pred_region
    _
  $region17: #{primary_cap_forward.1} parent=0 // pred_fallthru
    _
  %v17 = vld [vmem:[%s0] sm:$0xff]
  %v18 = vld [vmem:[%s0 + $0x8] sm:$0xff]
  %v19 = vld [vmem:[%s0 + $0x10] sm:$0xff]
  %v20 = vld [vmem:[%s0 + $0x18] sm:$0xff]
  %v21 = vld [vmem:[%s1] sm:$0xff]
  %v22 = vld [vmem:[%s1 + $0x8] sm:$0xff]
  %v23 = vld [vmem:[%s1 + $0x10] sm:$0xff]
  %v24 = vld [vmem:[%s1 + $0x18] sm:$0xff]
  %v25 = vld [vmem:[%s1 + $0x20] sm:$0xf]
  %vm26 = vcmask 293888
  %v28 = vsel %vm26, %v17, 0
  %v31 = vsel %vm26, %v18, 0
  %v34 = vsel %vm26, %v19, 0
  %v37 = vsel %vm26, %v20, 0
  %vm39 = vcmask 1043456
  %v41 = vsel %vm39, %v25, 0
  %43 = vmatprep.subr.mxu0 0.0
  %44 = vmatpush1.msra.mxu0 0.0
  %45 = vmatprep.subr.mxu0 0.0
  %46 = vmatpush1.msra.mxu0 0.0
  %47 = vmatprep.subr.mxu0 0.0
  %48 = vmatpush1.msra.mxu0 0.0
  %49 = vmatprep.subr.mxu0 0.0
  %50 = vmatpush1.msra.mxu0 0.0
  %51 = vmatprep.subr.mxu0 0.0
  %52 = vmatpush1.msra.mxu0 0.0
  %53 = vmatprep.subr.mxu0 0.0
  %54 = vmatpush1.msra.mxu0 0.0
  %55 = vmatprep.subr.mxu0 0.0
  %56 = vmatpush1.msra.mxu0 0.0
  %57 = vmatprep.subr.mxu0 0.0
  %58 = vmatpush1.msra.mxu0 0.0
  %59 = vmatprep.subr.mxu0 0.0
  %60 = vmatpush1.msra.mxu0 0.0
  %61 = vmatprep.subr.mxu0 0.0
  %62 = vmatpush1.msra.mxu0 0.0
  %63 = vmatprep.subr.mxu0 0.0
  %64 = vmatpush1.msra.mxu0 0.0
  %65 = vmatprep.subr.mxu0 0.0
  %66 = vmatpush1.msra.mxu0 %v41
  %67 = vmatprep.subr.mxu0 0.0
  %68 = vmatpush1.msra.mxu0 %v24
  %69 = vmatprep.subr.mxu0 0.0
  %70 = vmatpush1.msra.mxu0 %v23
  %71 = vmatprep.subr.mxu0 0.0
  %72 = vmatpush1.msra.mxu0 %v22
  %73 = vmatprep.subr.mxu0 0.0
  %74 = vmatpush1.msra.mxu0 %v21
  %75 = vmatprep.subr.mxu0 0.0
  %76 = vmatpush2.msra.mxu0 0.0
  %77 = vmatprep.subr.mxu0 0.0
  %78 = vmatpush2.msra.mxu0 0.0
  %79 = vmatprep.subr.mxu0 0.0
  %80 = vmatpush2.msra.mxu0 0.0
  %81 = vmatprep.subr.mxu0 0.0
  %82 = vmatpush2.msra.mxu0 0.0
  %83 = vmatprep.subr.mxu0 0.0
  %84 = vmatpush2.msra.mxu0 0.0
  %85 = vmatprep.subr.mxu0 0.0
  %86 = vmatpush2.msra.mxu0 0.0
  %87 = vmatprep.subr.mxu0 0.0
  %88 = vmatpush2.msra.mxu0 0.0
  %89 = vmatprep.subr.mxu0 0.0
  %90 = vmatpush2.msra.mxu0 0.0
  %91 = vmatprep.subr.mxu0 0.0
  %92 = vmatpush2.msra.mxu0 0.0
  %93 = vmatprep.subr.mxu0 0.0
  %94 = vmatpush2.msra.mxu0 0.0
  %95 = vmatprep.subr.mxu0 0.0
  %96 = vmatpush2.msra.mxu0 0.0
  %97 = vmatprep.subr.mxu0 0.0
  %98 = vmatpush2.msra.mxu0 0.0
  %99 = vmatprep.subr.mxu0 0.0
  %100 = vmatpush2.msra.mxu0 0.0
  %101 = vmatprep.subr.mxu0 0.0
  %102 = vmatpush2.msra.mxu0 0.0
  %103 = vmatprep.subr.mxu0 0.0
  %104 = vmatpush2.msra.mxu0 0.0
  %105 = vmatprep.subr.mxu0 0.0
  %106 = vmatpush2.msra.mxu0 0.0
  %107 = vmatprep.mubr.f32.mxu0 0.0
  %108 = vmatmul.mubr.f32.gmra.mxu0 %v28
  %v109 = vpop.f32.mrf.mxu0
  %v110 = vadd.f32 0.0, %v109
  %v111 = vpop.f32.mrf.mxu0
  %112 = vmatprep.mubr.f32.mxu0 0.0
  %113 = vmatmul.mubr.f32.gmra.mxu0 %v31
  %v114 = vpop.f32.mrf.mxu0
  %v115 = vadd.f32 0.0, %v114
  %v116 = vpop.f32.mrf.mxu0
  %117 = vmatprep.mubr.f32.mxu0 0.0
  %118 = vmatmul.mubr.f32.gmra.mxu0 %v34
  %v119 = vpop.f32.mrf.mxu0
  %v120 = vadd.f32 0.0, %v119
  %v121 = vpop.f32.mrf.mxu0
  %122 = vmatprep.mubr.f32.mxu0 0.0
  %123 = vmatmul.mubr.f32.gmra.mxu0 %v37
  %v124 = vpop.f32.mrf.mxu0
  %v125 = vadd.f32 0.0, %v124
  %v126 = vpop.f32.mrf.mxu0
  %127 = vdwg.mxu0
  %128 = vst [vmem:[%s4] sm:$0xff] %v110
  %129 = vst [vmem:[%s4 + $0x8] sm:$0xff] %v115
  %130 = vst [vmem:[%s4 + $0x10] sm:$0xff] %v120
  %131 = vst [vmem:[%s4 + $0x18] sm:$0xff] %v125
  %p132 = scmp.eq.s32.totalorder 0, 0
  // Predicated region
  $region18: #{primary_cap_forward.1} parent=0 // pred_check
    %p133 = pneg %p132
  $region19: #{primary_cap_forward.1} parent=0 // pred_check_branch
    %135 = sbr.rel (%p133) target = $region21
  $region20: #{primary_cap_forward.1} parent=0 // pred_region
    %v136 = vld [vmem:[%s4] sm:$0xff]
    %v137 = vld [vmem:[%s4 + $0x8] sm:$0xff]
    %v138 = vld [vmem:[%s4 + $0x10] sm:$0xff]
    %v139 = vld [vmem:[%s4 + $0x18] sm:$0xff]
    %v140 = vld [vmem:[%s2] sm:$0xff]
    %v141 = vld [vmem:[%s2 + $0x8] sm:$0xff]
    %v142 = vld [vmem:[%s2 + $0x10] sm:$0xff]
    %v143 = vld [vmem:[%s2 + $0x18] sm:$0xff]
    %145 = vset.pattern.permute.xlu0 0
    %146 = vperm.xlu0 %145, %v140
    %v147 = vpop.permute.xlu0 %146
    %150 = vset.pattern.permute.xlu0 0
    %151 = vperm.xlu0 %150, %v141
    %v152 = vpop.permute.xlu0 %151
    %155 = vset.pattern.permute.xlu0 0
    %156 = vperm.xlu0 %155, %v142
    %v157 = vpop.permute.xlu0 %156
    %160 = vset.pattern.permute.xlu0 0
    %161 = vperm.xlu0 %160, %v143
    %v162 = vpop.permute.xlu0 %161
    %v164 = vadd.f32 %v136, %v147
    %v165 = vadd.f32 %v137, %v152
    %v166 = vadd.f32 %v138, %v157
    %v167 = vadd.f32 %v139, %v162
    %v168 = vmul.f32 %v164, %v164
    %v169 = vmul.f32 %v165, %v165
    %v170 = vmul.f32 %v166, %v166
    %v171 = vmul.f32 %v167, %v167
    %v172 = vld [vmem:[%s3] sm:$0xff]
    %v173 = vld [vmem:[%s3 + $0x8] sm:$0xff]
    %v174 = vld [vmem:[%s3 + $0x10] sm:$0xff]
    %v175 = vld [vmem:[%s3 + $0x18] sm:$0xff]
    %v176 = vld [vmem:[%s3 + $0x20] sm:$0xff]
    %v177 = vld [vmem:[%s3 + $0x28] sm:$0xff]
    %v178 = vld [vmem:[%s3 + $0x30] sm:$0xff]
    %v179 = vld [vmem:[%s3 + $0x38] sm:$0xff]
    %v180 = vld [vmem:[%s3 + $0x40] sm:$0xff]
    %v181 = vld [vmem:[%s3 + $0x48] sm:$0xff]
    %v182 = vld [vmem:[%s3 + $0x50] sm:$0xff]
    %v183 = vld [vmem:[%s3 + $0x58] sm:$0xff]
    %v184 = vld [vmem:[%s3 + $0x60] sm:$0xff]
    %v185 = vld [vmem:[%s3 + $0x68] sm:$0xff]
    %v186 = vld [vmem:[%s3 + $0x70] sm:$0xff]
    %v187 = vld [vmem:[%s3 + $0x78] sm:$0xff]
    %188 = vmatprep.subr.mxu0 0.0
    %189 = vmatpush1.msra.mxu0 %v187
    %190 = vmatprep.subr.mxu0 0.0
    %191 = vmatpush1.msra.mxu0 %v186
    %192 = vmatprep.subr.mxu0 0.0
    %193 = vmatpush1.msra.mxu0 %v185
    %194 = vmatprep.subr.mxu0 0.0
    %195 = vmatpush1.msra.mxu0 %v184
    %196 = vmatprep.subr.mxu0 0.0
    %197 = vmatpush1.msra.mxu0 %v183
    %198 = vmatprep.subr.mxu0 0.0
    %199 = vmatpush1.msra.mxu0 %v182
    %200 = vmatprep.subr.mxu0 0.0
    %201 = vmatpush1.msra.mxu0 %v181
    %202 = vmatprep.subr.mxu0 0.0
    %203 = vmatpush1.msra.mxu0 %v180
    %204 = vmatprep.subr.mxu0 0.0
    %205 = vmatpush1.msra.mxu0 %v179
    %206 = vmatprep.subr.mxu0 0.0
    %207 = vmatpush1.msra.mxu0 %v178
    %208 = vmatprep.subr.mxu0 0.0
    %209 = vmatpush1.msra.mxu0 %v177
    %210 = vmatprep.subr.mxu0 0.0
    %211 = vmatpush1.msra.mxu0 %v176
    %212 = vmatprep.subr.mxu0 0.0
    %213 = vmatpush1.msra.mxu0 %v175
    %214 = vmatprep.subr.mxu0 0.0
    %215 = vmatpush1.msra.mxu0 %v174
    %216 = vmatprep.subr.mxu0 0.0
    %217 = vmatpush1.msra.mxu0 %v173
    %218 = vmatprep.subr.mxu0 0.0
    %219 = vmatpush1.msra.mxu0 %v172
    %220 = vmatprep.subr.mxu0 0.0
    %221 = vmatpush2.msra.mxu0 0.0
    %222 = vmatprep.subr.mxu0 0.0
    %223 = vmatpush2.msra.mxu0 0.0
    %224 = vmatprep.subr.mxu0 0.0
    %225 = vmatpush2.msra.mxu0 0.0
    %226 = vmatprep.subr.mxu0 0.0
    %227 = vmatpush2.msra.mxu0 0.0
    %228 = vmatprep.subr.mxu0 0.0
    %229 = vmatpush2.msra.mxu0 0.0
    %230 = vmatprep.subr.mxu0 0.0
    %231 = vmatpush2.msra.mxu0 0.0
    %232 = vmatprep.subr.mxu0 0.0
    %233 = vmatpush2.msra.mxu0 0.0
    %234 = vmatprep.subr.mxu0 0.0
    %235 = vmatpush2.msra.mxu0 0.0
    %236 = vmatprep.subr.mxu0 0.0
    %237 = vmatpush2.msra.mxu0 0.0
    %238 = vmatprep.subr.mxu0 0.0
    %239 = vmatpush2.msra.mxu0 0.0
    %240 = vmatprep.subr.mxu0 0.0
    %241 = vmatpush2.msra.mxu0 0.0
    %242 = vmatprep.subr.mxu0 0.0
    %243 = vmatpush2.msra.mxu0 0.0
    %244 = vmatprep.subr.mxu0 0.0
    %245 = vmatpush2.msra.mxu0 0.0
    %246 = vmatprep.subr.mxu0 0.0
    %247 = vmatpush2.msra.mxu0 0.0
    %248 = vmatprep.subr.mxu0 0.0
    %249 = vmatpush2.msra.mxu0 0.0
    %250 = vmatprep.subr.mxu0 0.0
    %251 = vmatpush2.msra.mxu0 0.0
    %252 = vmatprep.mubr.f32.mxu0 0.0
    %253 = vmatmul.mubr.f32.gmra.mxu0 %v168
    %v254 = vpop.f32.mrf.mxu0
    %v255 = vadd.f32 0.0, %v254
    %v256 = vpop.f32.mrf.mxu0
    %257 = vmatprep.mubr.f32.mxu0 0.0
    %258 = vmatmul.mubr.f32.gmra.mxu0 %v169
    %v259 = vpop.f32.mrf.mxu0
    %v260 = vadd.f32 0.0, %v259
    %v261 = vpop.f32.mrf.mxu0
    %262 = vmatprep.mubr.f32.mxu0 0.0
    %263 = vmatmul.mubr.f32.gmra.mxu0 %v170
    %v264 = vpop.f32.mrf.mxu0
    %v265 = vadd.f32 0.0, %v264
    %v266 = vpop.f32.mrf.mxu0
    %267 = vmatprep.mubr.f32.mxu0 0.0
    %268 = vmatmul.mubr.f32.gmra.mxu0 %v171
    %v269 = vpop.f32.mrf.mxu0
    %v270 = vadd.f32 0.0, %v269
    %v271 = vpop.f32.mrf.mxu0
    %272 = vdwg.mxu0
    %v273 = vadd.f32 %v255, 1.0
    %v274 = vadd.f32 %v260, 1.0
    %v275 = vadd.f32 %v265, 1.0
    %v276 = vadd.f32 %v270, 1.0
    %v277 = vrcp.pop %v273
    %v278 = vrcp.pop %v274
    %v279 = vrcp.pop %v275
    %v280 = vrcp.pop %v276
    %v281 = vmul.f32 %v255, %v277
    %v282 = vmul.f32 %v260, %v278
    %v283 = vmul.f32 %v265, %v279
    %v284 = vmul.f32 %v270, %v280
    %v285 = vadd.f32 %v255, 1e-09
    %v286 = vadd.f32 %v260, 1e-09
    %v287 = vadd.f32 %v265, 1e-09
    %v288 = vadd.f32 %v270, 1e-09
    %v289 = vrsqrt.pop %v285
    %v290 = vrsqrt.pop %v286
    %v291 = vrsqrt.pop %v287
    %v292 = vrsqrt.pop %v288
    %v293 = vmul.f32 %v281, %v289
    %v294 = vmul.f32 %v282, %v290
    %v295 = vmul.f32 %v283, %v291
    %v296 = vmul.f32 %v284, %v292
    %v297 = vmul.f32 %v293, %v164
    %v298 = vmul.f32 %v294, %v165
    %v299 = vmul.f32 %v295, %v166
    %v300 = vmul.f32 %v296, %v167
    %301 = vst [vmem:[%s4] sm:$0xff] %v297
    %302 = vst [vmem:[%s4 + $0x8] sm:$0xff] %v298
    %303 = vst [vmem:[%s4 + $0x10] sm:$0xff] %v299
    %304 = vst [vmem:[%s4 + $0x18] sm:$0xff] %v300
  $region21: #{primary_cap_forward.1} parent=0 // pred_fallthru
    _
  // Predicated region
  $region22: #{primary_cap_forward.1} parent=0 // pred_check
    _
  $region23: #{primary_cap_forward.1} parent=0 // pred_check_branch
    %306 = sbr.rel (0) target = $region25
  $region24: #{primary_cap_forward.1} parent=0 // pred_region
    _
  $region25: #{primary_cap_forward.1} parent=0 // pred_fallthru
    _
  // Predicated region
  $region26: #{primary_cap_forward.1} parent=0 // pred_check
    _
  $region27: #{primary_cap_forward.1} parent=0 // pred_check_branch
    %308 = sbr.rel (0) target = $region29
  $region28: #{primary_cap_forward.1} parent=0 // pred_region
    _
  $region29: #{primary_cap_forward.1} parent=0 // pred_fallthru
    _

</llo_original>
